<compile_context>
chip_gen: v7x
topology: tpu7x:2x2x1
jax: 0.10.0
libtpu: 0.0.40
codegen_flags: <defaults>
</compile_context>

<pallas_src>
import jax
import jax.numpy as jnp
from jax import lax
from jax.experimental import pallas as pl
from jax.experimental.pallas import tpu as pltpu

# Layer sizes of the PyTorch module (out_features, in_features), PyTorch Linear layout.
_LAYER_SHAPES = [(32, 24), (16, 32), (8, 16), (1, 8)]
_PAD = 32  # all layers zero-padded into one 32x32-per-layer slab; padding is exact.


def _round_up(n, m):
    return ((n + m - 1) // m) * m


def _mlp_kernel(x_ref, w_ref, b_ref, o_ref):
    # x_ref : (tile_b, 24)  natural batch-major input tile (no wrapper transpose)
    # w_ref : (4, 32, 32)   zero-padded weight slab, PyTorch (out, in) layout
    # b_ref : (32, 4)       zero-padded bias slab, one column per layer
    # o_ref : (1, tile_b)   lane-dense output row (batch on lanes)
    x = x_ref[...]                                   # (tile_b, 24)
    b = b_ref[...]                                   # (32, 4)

    # Layer 1: contract x's 24 features (dim 1) against fc1's in-dim (dim 1 of the
    # PyTorch (out, in) weight) -> result is (32, tile_b), batch on the lane axis.
    w1 = w_ref[0][:, 0:24]                           # (32, 24)
    h = lax.dot_general(w1, x, (((1,), (1,)), ((), ())),
                        preferred_element_type=jnp.float32)      # (32, tile_b)
    h = jnp.maximum(h + b[:, 0:1], 0.0)

    # Layers 2-3 at their true widths (16, 8): smaller intermediates / VPU work.
    w2 = w_ref[1][0:16, :]                           # (16, 32)
    h = lax.dot_general(w2, h, (((1,), (0,)), ((), ())),
                        preferred_element_type=jnp.float32)      # (16, tile_b)
    h = jnp.maximum(h + b[0:16, 1:2], 0.0)

    w3 = w_ref[2][0:8, 0:16]                         # (8, 16)
    h = lax.dot_general(w3, h, (((1,), (0,)), ((), ())),
                        preferred_element_type=jnp.float32)      # (8, tile_b)
    h = jnp.maximum(h + b[0:8, 2:3], 0.0)

    # Layer 4: keep 8 (zero-padded) output rows; row 0 holds the real 1-dim output.
    w4 = w_ref[3][0:8, 0:8]                          # (8, 8), rows 1..7 are zero
    out = lax.dot_general(w4, h, (((1,), (0,)), ((), ())),
                          preferred_element_type=jnp.float32)    # (8, tile_b)
    out = out + b[0:8, 3:4]
    o_ref[...] = out[0:1, :].astype(o_ref.dtype)


def _pack_params(params):
    """Pack PyTorch-layout params ((out,in) weights, (out,) biases) into two slabs."""
    w_slab = jnp.zeros((4, _PAD, _PAD), jnp.float32)
    b_slab = jnp.zeros((_PAD, 4), jnp.float32)
    for l, (o, i) in enumerate(_LAYER_SHAPES):
        w_slab = w_slab.at[l, :o, :i].set(params[f"w{l + 1}"].astype(jnp.float32))
        b_slab = b_slab.at[:o, l].set(params[f"b{l + 1}"].astype(jnp.float32))
    return w_slab, b_slab


def _choose_grid(batch, max_tile_b):
    """Pick a 128-multiple batch tile: large (amortize grid-step overhead), but with
    >=2 tiles when the batch allows so the 'parallel' axis can shard across
    TensorCores (v7x megacore), and with minimal over-padding for ragged batches."""
    max_tile_b = max(128, _round_up(max_tile_b, 128))
    b128 = _round_up(max(batch, 1), 128)
    n_tiles = -(-b128 // max_tile_b)                 # ceil-div
    if n_tiles == 1 and b128 >= 256:
        n_tiles = 2
    tile_b = _round_up(-(-b128 // n_tiles), 128)
    b_pad = n_tiles * tile_b
    return tile_b, b_pad


def cmapss_fcnn_forward(x, params, *, max_tile_b=8192):
    """x: (B, 24) float32.  params: PyTorch-layout w1..w4 (out,in), b1..b4 (out,)."""
    B, D_in = x.shape
    assert D_in == 24
    x = x.astype(jnp.float32)

    tile_b, B_pad = _choose_grid(B, max_tile_b)
    grid = (B_pad // tile_b,)

    # Natural (B, 24) layout is fed straight to the kernel.  A zero-pad along the
    # batch axis is only materialized when B is not already tile-aligned; padded
    # rows never mix with real rows (batch is a free dim), so this is exact.
    if B_pad != B:
        x = jnp.pad(x, ((0, B_pad - B), (0, 0)))

    w_slab, b_slab = _pack_params(params)

    flops = 2 * B_pad * sum(o * i for o, i in _LAYER_SHAPES)
    bytes_accessed = 4 * (B_pad * D_in + B_pad + w_slab.size + b_slab.size)

    out_t = pl.pallas_call(
        _mlp_kernel,
        out_shape=jax.ShapeDtypeStruct((1, B_pad), jnp.float32),
        grid_spec=pltpu.PrefetchScalarGridSpec(
            num_scalar_prefetch=0,
            grid=grid,
            in_specs=[
                pl.BlockSpec((tile_b, D_in), lambda i: (i, 0)),      # x, natural layout
                pl.BlockSpec((4, _PAD, _PAD), lambda i: (0, 0, 0)),  # resident weights
                pl.BlockSpec((_PAD, 4), lambda i: (0, 0)),           # resident biases
            ],
            out_specs=pl.BlockSpec((1, tile_b), lambda i: (0, i)),   # lane-dense output
        ),
        compiler_params=pltpu.CompilerParams(
            dimension_semantics=("parallel",),
            # Larger batch tiles need more than v5e's 16 MiB default scoped VMEM;
            # 48 MiB stays within every generation's physical budget (v7x: 64 MiB/TC).
            vmem_limit_bytes=48 * 1024 * 1024),
        cost_estimate=pl.CostEstimate(
            flops=flops, transcendentals=0, bytes_accessed=bytes_accessed),
    )(x, w_slab, b_slab)

    # Drop batch padding, restore (B, 1) batch-major layout (tiny: only B elements).
    return out_t[:, :B].T


def init_params(key):
    """Deterministic synthetic parameters in PyTorch nn.Linear layout."""
    params = {}
    for idx, (fan_out, fan_in) in enumerate(_LAYER_SHAPES, start=1):
        key, kw, kb = jax.random.split(key, 3)
        bound = 1.0 / jnp.sqrt(fan_in)  # PyTorch default Linear init range
        params[f"w{idx}"] = jax.random.uniform(
            kw, (fan_out, fan_in), jnp.float32, -bound, bound)
        params[f"b{idx}"] = jax.random.uniform(
            kb, (fan_out,), jnp.float32, -bound, bound)
    return params


def reference_forward(x, p):
    h = jnp.maximum(x @ p["w1"].T + p["b1"], 0.0)
    h = jnp.maximum(h @ p["w2"].T + p["b2"], 0.0)
    h = jnp.maximum(h @ p["w3"].T + p["b3"], 0.0)
    return h @ p["w4"].T + p["b4"]


if __name__ == "__main__":
    key = jax.random.PRNGKey(0)
    key, kx = jax.random.split(key)
    B = 16  # small demo batch; wrapper pads it to one 128-lane tile
    x = jax.random.normal(kx, (B, 24), jnp.float32)
    params = init_params(key)

    out = jax.block_until_ready(cmapss_fcnn_forward(x, params))
    ref = reference_forward(x, params)

    assert out.shape == (B, 1)
    assert jnp.allclose(out, ref, atol=1e-4, rtol=1e-4)
    print("KERNEL_OK")
</pallas_src>

<mosaic_0001>
module attributes {stable_mosaic.version = 11 : i64} {
  func.func @_mlp_kernel(%arg0: i32, %arg1: memref<128x24xf32, #tpu.memory_space<vmem>>, %arg2: memref<4x32x32xf32, #tpu.memory_space<vmem>>, %arg3: memref<32x4xf32, #tpu.memory_space<vmem>>, %arg4: memref<1x128xf32, #tpu.memory_space<vmem>>) attributes {dimension_semantics = [#tpu.dimension_semantics<parallel>], iteration_bounds = array<i64: 1>, scalar_prefetch = 0 : i64, scratch_operands = 0 : i64, tpu.core_type = #tpu.core_type<tc>, window_params = [{transform_indices = @transform_0, window_bounds = array<i64: 128, 24>}, {pipeline_mode = #tpu.pipeline_mode<synchronous>, transform_indices = @transform_1, window_bounds = array<i64: 4, 32, 32>}, {pipeline_mode = #tpu.pipeline_mode<synchronous>, transform_indices = @transform_2, window_bounds = array<i64: 32, 4>}, {transform_indices = @transform_3, window_bounds = array<i64: 1, 128>}]} {
    %c0 = arith.constant 0 : index
    %c0_0 = arith.constant 0 : index
    %0 = vector.load %arg1[%c0, %c0_0] : memref<128x24xf32, #tpu.memory_space<vmem>>, vector<128x24xf32>
    %c0_1 = arith.constant 0 : index
    %c0_2 = arith.constant 0 : index
    %1 = vector.load %arg3[%c0_1, %c0_2] : memref<32x4xf32, #tpu.memory_space<vmem>>, vector<32x4xf32>
    %c0_3 = arith.constant 0 : index
    %c0_4 = arith.constant 0 : index
    %c0_5 = arith.constant 0 : index
    %2 = vector.load %arg2[%c0_3, %c0_4, %c0_5] : memref<4x32x32xf32, #tpu.memory_space<vmem>>, vector<1x32x32xf32>
    %3 = vector.shape_cast %2 : vector<1x32x32xf32> to vector<32x32xf32>
    %4 = vector.extract_strided_slice %3 {offsets = [0, 0], sizes = [32, 24], strides = [1, 1]} : vector<32x32xf32> to vector<32x24xf32>
    %cst = arith.constant dense<0.000000e+00> : vector<32x128xf32>
    %5 = tpu.matmul %4, %0, %cst {dimension_numbers = #tpu.dot_dimension_numbers<[1], [1], [0], [0], [0, 0, 1, 0], [], []>} : vector<32x24xf32>, vector<128x24xf32>, vector<32x128xf32> -> vector<32x128xf32>
    %6 = vector.extract_strided_slice %1 {offsets = [0, 0], sizes = [32, 1], strides = [1, 1]} : vector<32x4xf32> to vector<32x1xf32>
    %7 = vector.broadcast %6 : vector<32x1xf32> to vector<32x128xf32>
    %8 = arith.addf %5, %7 : vector<32x128xf32>
    %cst_6 = arith.constant 0.000000e+00 : f32
    %9 = vector.broadcast %cst_6 : f32 to vector<32x128xf32>
    %10 = arith.maximumf %8, %9 : vector<32x128xf32>
    %c1 = arith.constant 1 : index
    %c0_7 = arith.constant 0 : index
    %c0_8 = arith.constant 0 : index
    %11 = vector.load %arg2[%c1, %c0_7, %c0_8] : memref<4x32x32xf32, #tpu.memory_space<vmem>>, vector<1x32x32xf32>
    %12 = vector.shape_cast %11 : vector<1x32x32xf32> to vector<32x32xf32>
    %13 = vector.extract_strided_slice %12 {offsets = [0, 0], sizes = [16, 32], strides = [1, 1]} : vector<32x32xf32> to vector<16x32xf32>
    %cst_9 = arith.constant dense<0.000000e+00> : vector<16x128xf32>
    %14 = tpu.matmul %13, %10, %cst_9 {dimension_numbers = #tpu.dot_dimension_numbers<[1], [0], [0], [1], [0, 0, 1, 1], [], []>} : vector<16x32xf32>, vector<32x128xf32>, vector<16x128xf32> -> vector<16x128xf32>
    %15 = vector.extract_strided_slice %1 {offsets = [0, 1], sizes = [16, 1], strides = [1, 1]} : vector<32x4xf32> to vector<16x1xf32>
    %16 = vector.broadcast %15 : vector<16x1xf32> to vector<16x128xf32>
    %17 = arith.addf %14, %16 : vector<16x128xf32>
    %cst_10 = arith.constant 0.000000e+00 : f32
    %18 = vector.broadcast %cst_10 : f32 to vector<16x128xf32>
    %19 = arith.maximumf %17, %18 : vector<16x128xf32>
    %c2 = arith.constant 2 : index
    %c0_11 = arith.constant 0 : index
    %c0_12 = arith.constant 0 : index
    %20 = vector.load %arg2[%c2, %c0_11, %c0_12] : memref<4x32x32xf32, #tpu.memory_space<vmem>>, vector<1x32x32xf32>
    %21 = vector.shape_cast %20 : vector<1x32x32xf32> to vector<32x32xf32>
    %22 = vector.extract_strided_slice %21 {offsets = [0, 0], sizes = [8, 16], strides = [1, 1]} : vector<32x32xf32> to vector<8x16xf32>
    %cst_13 = arith.constant dense<0.000000e+00> : vector<8x128xf32>
    %23 = tpu.matmul %22, %19, %cst_13 {dimension_numbers = #tpu.dot_dimension_numbers<[1], [0], [0], [1], [0, 0, 1, 1], [], []>} : vector<8x16xf32>, vector<16x128xf32>, vector<8x128xf32> -> vector<8x128xf32>
    %24 = vector.extract_strided_slice %1 {offsets = [0, 2], sizes = [8, 1], strides = [1, 1]} : vector<32x4xf32> to vector<8x1xf32>
    %25 = vector.broadcast %24 : vector<8x1xf32> to vector<8x128xf32>
    %26 = arith.addf %23, %25 : vector<8x128xf32>
    %cst_14 = arith.constant 0.000000e+00 : f32
    %27 = vector.broadcast %cst_14 : f32 to vector<8x128xf32>
    %28 = arith.maximumf %26, %27 : vector<8x128xf32>
    %c3 = arith.constant 3 : index
    %c0_15 = arith.constant 0 : index
    %c0_16 = arith.constant 0 : index
    %29 = vector.load %arg2[%c3, %c0_15, %c0_16] : memref<4x32x32xf32, #tpu.memory_space<vmem>>, vector<1x32x32xf32>
    %30 = vector.shape_cast %29 : vector<1x32x32xf32> to vector<32x32xf32>
    %31 = vector.extract_strided_slice %30 {offsets = [0, 0], sizes = [8, 8], strides = [1, 1]} : vector<32x32xf32> to vector<8x8xf32>
    %cst_17 = arith.constant dense<0.000000e+00> : vector<8x128xf32>
    %32 = tpu.matmul %31, %28, %cst_17 {dimension_numbers = #tpu.dot_dimension_numbers<[1], [0], [0], [1], [0, 0, 1, 1], [], []>} : vector<8x8xf32>, vector<8x128xf32>, vector<8x128xf32> -> vector<8x128xf32>
    %33 = vector.extract_strided_slice %1 {offsets = [0, 3], sizes = [8, 1], strides = [1, 1]} : vector<32x4xf32> to vector<8x1xf32>
    %34 = vector.broadcast %33 : vector<8x1xf32> to vector<8x128xf32>
    %35 = arith.addf %32, %34 : vector<8x128xf32>
    %36 = vector.extract_strided_slice %35 {offsets = [0, 0], sizes = [1, 128], strides = [1, 1]} : vector<8x128xf32> to vector<1x128xf32>
    %c0_18 = arith.constant 0 : index
    %c0_19 = arith.constant 0 : index
    %37 = vector.load %arg4[%c0_18, %c0_19] : memref<1x128xf32, #tpu.memory_space<vmem>>, vector<1x128xf32>
    tpu.vector_store %arg4[%c0_18, %c0_19], %36 {strides = array<i32>} : memref<1x128xf32, #tpu.memory_space<vmem>>, vector<1x128xf32>,
    return
  }
  func.func @transform_0(%arg0: i32) -> (i32, i32) {
    %c0_i32 = arith.constant 0 : i32
    %c0_i32_0 = arith.constant 0 : i32
    return %arg0, %c0_i32 : i32, i32
  }
  func.func @transform_1(%arg0: i32) -> (i32, i32, i32) {
    %c0_i32 = arith.constant 0 : i32
    %c0_i32_0 = arith.constant 0 : i32
    %c0_i32_1 = arith.constant 0 : i32
    %c0_i32_2 = arith.constant 0 : i32
    return %c0_i32, %c0_i32_0, %c0_i32_1 : i32, i32, i32
  }
  func.func @transform_2(%arg0: i32) -> (i32, i32) {
    %c0_i32 = arith.constant 0 : i32
    %c0_i32_0 = arith.constant 0 : i32
    %c0_i32_1 = arith.constant 0 : i32
    return %c0_i32, %c0_i32_0 : i32, i32
  }
  func.func @transform_3(%arg0: i32) -> (i32, i32) {
    %c0_i32 = arith.constant 0 : i32
    %c0_i32_0 = arith.constant 0 : i32
    return %c0_i32, %arg0 : i32, i32
  }
}

</mosaic_0001>

<llo_original>
// kernel: tpu_custom_call.1
$region0: #{tpu_custom_call.1}
  #allocation0 [shape = 'u32[]', space=smem, size = 0x4, offset = 0x4, fixed_abs, tag = 'smem constant byte address 0x4 - core index']
  #allocation1 [shape = 'u32[144,128]{1,0:T(1,128)}', space=vmem, size = 0x12000, scoped, tag = 'internal scratch']
  %s0 = inlined_call_operand.vmem [shape: f32[128,24], index: 0, kind: input, shape index: {}]
  %s1 = inlined_call_operand.vmem [shape: f32[4,32,32], index: 1, kind: input, shape index: {}]
  %s2 = inlined_call_operand.vmem [shape: f32[32,4], index: 2, kind: input, shape index: {}]
  %s3 = inlined_call_operand.hbm [shape: f32[1,128], index: 3, kind: output, shape index: {}]
  %s4 = sld [smem:[#allocation0]]
  $region22: #{tpu_custom_call.1} parent=0
    _
  %s6 = ssub.s32 1, %s4
  %s7 = scalar_select 0, %s6, %s4
  $region1: #{tpu_custom_call.1} parent=0
    #allocation2 [shape = 'u8[512]{0}', space=vmem, size = 0x400, scoped, tag = 'output window, operand 0, single buffered']
    #allocation3 [shape = 's32[1]{0}', space=sflag, size = 0x4, scoped, tag = 'scoped memory for tpu_custom_call.1']
    %8 = vsyncpa [#allocation3], 0
    // Predicated region
    $region2: #{tpu_custom_call.1} parent=1 // pred_check
      _
    $region3: #{tpu_custom_call.1} parent=1 // pred_check_branch
      %10 = sbr.rel (0) target = $region5
    $region4: #{tpu_custom_call.1} parent=1 // pred_region
      _
    $region5: #{tpu_custom_call.1} parent=1 // pred_fallthru
      _
    // Predicated region
    $region6: #{tpu_custom_call.1} parent=1 // pred_check
      _
    $region7: #{tpu_custom_call.1} parent=1 // pred_check_branch
      %12 = sbr.rel (0) target = $region9
    $region8: #{tpu_custom_call.1} parent=1 // pred_region
      _
    $region9: #{tpu_custom_call.1} parent=1 // pred_fallthru
      _
    // Predicated region
    $region10: #{tpu_custom_call.1} parent=1 // pred_check
      _
    $region11: #{tpu_custom_call.1} parent=1 // pred_check_branch
      %14 = sbr.rel (0) target = $region13
    $region12: #{tpu_custom_call.1} parent=1 // pred_region
      _
    $region13: #{tpu_custom_call.1} parent=1 // pred_fallthru
      _
    %v15 = vld [vmem:[%s0] sm:$0xff]
    %v16 = vld [vmem:[%s0 + $0x8] sm:$0xff]
    %v17 = vld [vmem:[%s0 + $0x10] sm:$0xff]
    %v18 = vld [vmem:[%s0 + $0x18] sm:$0xff]
    %v19 = vld [vmem:[%s0 + $0x20] sm:$0xff]
    %v20 = vld [vmem:[%s0 + $0x28] sm:$0xff]
    %v21 = vld [vmem:[%s0 + $0x30] sm:$0xff]
    %v22 = vld [vmem:[%s0 + $0x38] sm:$0xff]
    %v23 = vld [vmem:[%s0 + $0x40] sm:$0xff]
    %v24 = vld [vmem:[%s0 + $0x48] sm:$0xff]
    %v25 = vld [vmem:[%s0 + $0x50] sm:$0xff]
    %v26 = vld [vmem:[%s0 + $0x58] sm:$0xff]
    %v27 = vld [vmem:[%s0 + $0x60] sm:$0xff]
    %v28 = vld [vmem:[%s0 + $0x68] sm:$0xff]
    %v29 = vld [vmem:[%s0 + $0x70] sm:$0xff]
    %v30 = vld [vmem:[%s0 + $0x78] sm:$0xff]
    %v31 = vld [vmem:[%s2] sm:$0xff]
    %v32 = vld [vmem:[%s2 + $0x8] sm:$0xff]
    %v33 = vld [vmem:[%s2 + $0x10] sm:$0xff]
    %v34 = vld [vmem:[%s2 + $0x18] sm:$0xff]
    %v35 = vld [vmem:[%s1] sm:$0xff]
    %v36 = vld [vmem:[%s1 + $0x8] sm:$0xff]
    %v37 = vld [vmem:[%s1 + $0x10] sm:$0xff]
    %v38 = vld [vmem:[%s1 + $0x18] sm:$0xff]
    %40 = vset.pattern.permute.xlu0 0
    %41 = vperm.xlu0 %40, %v31
    %v42 = vpop.permute.xlu0 %41
    %45 = vset.pattern.permute.xlu0 0
    %46 = vperm.xlu0 %45, %v32
    %v47 = vpop.permute.xlu0 %46
    %50 = vset.pattern.permute.xlu0 0
    %51 = vperm.xlu0 %50, %v33
    %v52 = vpop.permute.xlu0 %51
    %55 = vset.pattern.permute.xlu0 0
    %56 = vperm.xlu0 %55, %v34
    %v57 = vpop.permute.xlu0 %56
    %vm59 = vcmask 195584
    %v61 = vsel %vm59, %v35, 0
    %v64 = vsel %vm59, %v36, 0
    %v67 = vsel %vm59, %v37, 0
    %v70 = vsel %vm59, %v38, 0
    %v73 = vsel %vm59, %v15, 0
    %v76 = vsel %vm59, %v16, 0
    %v79 = vsel %vm59, %v17, 0
    %v82 = vsel %vm59, %v18, 0
    %v85 = vsel %vm59, %v19, 0
    %v88 = vsel %vm59, %v20, 0
    %v91 = vsel %vm59, %v21, 0
    %v94 = vsel %vm59, %v22, 0
    %v97 = vsel %vm59, %v23, 0
    %v100 = vsel %vm59, %v24, 0
    %v103 = vsel %vm59, %v25, 0
    %v106 = vsel %vm59, %v26, 0
    %v109 = vsel %vm59, %v27, 0
    %v112 = vsel %vm59, %v28, 0
    %v115 = vsel %vm59, %v29, 0
    %v118 = vsel %vm59, %v30, 0
    %120 = vmatprep.subr.mxu0 0.0
    %121 = vmatpush1.xpose.msra.mxu0 %v73
    %122 = vmatprep.subr.mxu0 0.0
    %123 = vmatpush1.xpose.msra.mxu0 %v76
    %124 = vmatprep.subr.mxu0 0.0
    %125 = vmatpush1.xpose.msra.mxu0 %v79
    %126 = vmatprep.subr.mxu0 0.0
    %127 = vmatpush1.xpose.msra.mxu0 %v82
    %128 = vmatprep.subr.mxu0 0.0
    %129 = vmatpush1.xpose.msra.mxu0 %v85
    %130 = vmatprep.subr.mxu0 0.0
    %131 = vmatpush1.xpose.msra.mxu0 %v88
    %132 = vmatprep.subr.mxu0 0.0
    %133 = vmatpush1.xpose.msra.mxu0 %v91
    %134 = vmatprep.subr.mxu0 0.0
    %135 = vmatpush1.xpose.msra.mxu0 %v94
    %136 = vmatprep.subr.mxu0 0.0
    %137 = vmatpush1.xpose.msra.mxu0 %v97
    %138 = vmatprep.subr.mxu0 0.0
    %139 = vmatpush1.xpose.msra.mxu0 %v100
    %140 = vmatprep.subr.mxu0 0.0
    %141 = vmatpush1.xpose.msra.mxu0 %v103
    %142 = vmatprep.subr.mxu0 0.0
    %143 = vmatpush1.xpose.msra.mxu0 %v106
    %144 = vmatprep.subr.mxu0 0.0
    %145 = vmatpush1.xpose.msra.mxu0 %v109
    %146 = vmatprep.subr.mxu0 0.0
    %147 = vmatpush1.xpose.msra.mxu0 %v112
    %148 = vmatprep.subr.mxu0 0.0
    %149 = vmatpush1.xpose.msra.mxu0 %v115
    %150 = vmatprep.subr.mxu0 0.0
    %151 = vmatpush1.xpose.msra.mxu0 %v118
    %152 = vmatprep.subr.mxu0 0.0
    %153 = vmatpush1.xpose.msra.mxu0 0.0
    %154 = vmatprep.subr.mxu0 0.0
    %155 = vmatpush1.xpose.msra.mxu0 0.0
    %156 = vmatprep.subr.mxu0 0.0
    %157 = vmatpush1.xpose.msra.mxu0 0.0
    %158 = vmatprep.subr.mxu0 0.0
    %159 = vmatpush1.xpose.msra.mxu0 0.0
    %160 = vmatprep.subr.mxu0 0.0
    %161 = vmatpush1.xpose.msra.mxu0 0.0
    %162 = vmatprep.subr.mxu0 0.0
    %163 = vmatpush1.xpose.msra.mxu0 0.0
    %164 = vmatprep.subr.mxu0 0.0
    %165 = vmatpush1.xpose.msra.mxu0 0.0
    %166 = vmatprep.subr.mxu0 0.0
    %167 = vmatpush1.xpose.msra.mxu0 0.0
    %168 = vmatprep.subr.mxu0 0.0
    %169 = vmatpush1.xpose.msra.mxu0 0.0
    %170 = vmatprep.subr.mxu0 0.0
    %171 = vmatpush1.xpose.msra.mxu0 0.0
    %172 = vmatprep.subr.mxu0 0.0
    %173 = vmatpush1.xpose.msra.mxu0 0.0
    %174 = vmatprep.subr.mxu0 0.0
    %175 = vmatpush1.xpose.msra.mxu0 0.0
    %176 = vmatprep.subr.mxu0 0.0
    %177 = vmatpush1.xpose.msra.mxu0 0.0
    %178 = vmatprep.subr.mxu0 0.0
    %179 = vmatpush1.xpose.msra.mxu0 0.0
    %180 = vmatprep.subr.mxu0 0.0
    %181 = vmatpush1.xpose.msra.mxu0 0.0
    %182 = vmatprep.subr.mxu0 0.0
    %183 = vmatpush1.xpose.msra.mxu0 0.0
    %184 = vmatprep.mubr.f32.mxu0 0.0
    %185 = vmatmul.mubr.f32.gmra.mrb[0].mxu0 %v61
    %v186 = vpop.f32.mrb[0].mxu0
    %v187 = vadd.f32 %v42, %v186
    %v188 = vpop.f32.mrb[0].mxu0
    %189 = vmatprep.mubr.f32.mxu0 0.0
    %190 = vmatmul.mubr.f32.gmra.mrb[0].mxu0 %v64
    %v191 = vpop.f32.mrb[0].mxu0
    %v192 = vadd.f32 %v47, %v191
    %v193 = vpop.f32.mrb[0].mxu0
    %194 = vmatprep.mubr.f32.mxu0 0.0
    %195 = vmatmul.mubr.f32.gmra.mrb[0].mxu0 %v67
    %v196 = vpop.f32.mrb[0].mxu0
    %v197 = vadd.f32 %v52, %v196
    %v198 = vpop.f32.mrb[0].mxu0
    %199 = vmatprep.mubr.f32.mxu0 0.0
    %200 = vmatmul.mubr.f32.gmra.mrb[0].mxu0 %v70
    %v201 = vpop.f32.mrb[0].mxu0
    %v202 = vadd.f32 %v57, %v201
    %v203 = vpop.f32.mrb[0].mxu0
    %204 = vdwg.mxu0
    %v205 = vmax.f32 %v187, 0.0
    %v206 = vmax.f32 %v192, 0.0
    %v207 = vmax.f32 %v197, 0.0
    %v208 = vmax.f32 %v202, 0.0
    %s209 = scalar_lea.vmem %s1, 32
    %v210 = vld [vmem:[%s209] sm:$0xff]
    %v211 = vld [vmem:[%s209 + $0x8] sm:$0xff]
    %212 = vset.pattern.permute.xlu0 1
    %213 = vperm.xlu0 %212, %v31
    %v214 = vpop.permute.xlu0 %213
    %216 = vset.pattern.permute.xlu0 1
    %217 = vperm.xlu0 %216, %v32
    %v218 = vpop.permute.xlu0 %217
    %vm220 = vcmask 261120
    %v222 = vsel %vm220, %v210, 0
    %v225 = vsel %vm220, %v211, 0
    %227 = vmatprep.subr.mxu0 0.0
    %228 = vmatpush1.msra.mxu0 %v205
    %229 = vmatprep.subr.mxu0 0.0
    %230 = vmatpush1.msra.mxu0 %v206
    %231 = vmatprep.subr.mxu0 0.0
    %232 = vmatpush1.msra.mxu0 %v207
    %233 = vmatprep.subr.mxu0 0.0
    %234 = vmatpush1.msra.mxu0 %v208
    %235 = vmatprep.subr.mxu0 0.0
    %236 = vmatpush1.msra.mxu0 0.0
    %237 = vmatprep.subr.mxu0 0.0
    %238 = vmatpush1.msra.mxu0 0.0
    %239 = vmatprep.subr.mxu0 0.0
    %240 = vmatpush1.msra.mxu0 0.0
    %241 = vmatprep.subr.mxu0 0.0
    %242 = vmatpush1.msra.mxu0 0.0
    %243 = vmatprep.subr.mxu0 0.0
    %244 = vmatpush1.msra.mxu0 0.0
    %245 = vmatprep.subr.mxu0 0.0
    %246 = vmatpush1.msra.mxu0 0.0
    %247 = vmatprep.subr.mxu0 0.0
    %248 = vmatpush1.msra.mxu0 0.0
    %249 = vmatprep.subr.mxu0 0.0
    %250 = vmatpush1.msra.mxu0 0.0
    %251 = vmatprep.subr.mxu0 0.0
    %252 = vmatpush1.msra.mxu0 0.0
    %253 = vmatprep.subr.mxu0 0.0
    %254 = vmatpush1.msra.mxu0 0.0
    %255 = vmatprep.subr.mxu0 0.0
    %256 = vmatpush1.msra.mxu0 0.0
    %257 = vmatprep.subr.mxu0 0.0
    %258 = vmatpush1.msra.mxu0 0.0
    %259 = vmatprep.subr.mxu0 0.0
    %260 = vmatpush1.msra.mxu0 0.0
    %261 = vmatprep.subr.mxu0 0.0
    %262 = vmatpush1.msra.mxu0 0.0
    %263 = vmatprep.subr.mxu0 0.0
    %264 = vmatpush1.msra.mxu0 0.0
    %265 = vmatprep.subr.mxu0 0.0
    %266 = vmatpush1.msra.mxu0 0.0
    %267 = vmatprep.subr.mxu0 0.0
    %268 = vmatpush1.msra.mxu0 0.0
    %269 = vmatprep.subr.mxu0 0.0
    %270 = vmatpush1.msra.mxu0 0.0
    %271 = vmatprep.subr.mxu0 0.0
    %272 = vmatpush1.msra.mxu0 0.0
    %273 = vmatprep.subr.mxu0 0.0
    %274 = vmatpush1.msra.mxu0 0.0
    %275 = vmatprep.subr.mxu0 0.0
    %276 = vmatpush1.msra.mxu0 0.0
    %277 = vmatprep.subr.mxu0 0.0
    %278 = vmatpush1.msra.mxu0 0.0
    %279 = vmatprep.subr.mxu0 0.0
    %280 = vmatpush1.msra.mxu0 0.0
    %281 = vmatprep.subr.mxu0 0.0
    %282 = vmatpush1.msra.mxu0 0.0
    %283 = vmatprep.subr.mxu0 0.0
    %284 = vmatpush1.msra.mxu0 0.0
    %285 = vmatprep.subr.mxu0 0.0
    %286 = vmatpush1.msra.mxu0 0.0
    %287 = vmatprep.subr.mxu0 0.0
    %288 = vmatpush1.msra.mxu0 0.0
    %289 = vmatprep.subr.mxu0 0.0
    %290 = vmatpush1.msra.mxu0 0.0
    %291 = vmatprep.mubr.f32.mxu0 0.0
    %292 = vmatmul.mubr.f32.gmra.mrb[0].mxu0 %v222
    %v293 = vpop.f32.mrb[0].mxu0
    %v294 = vadd.f32 %v214, %v293
    %v295 = vpop.f32.mrb[0].mxu0
    %296 = vmatprep.mubr.f32.mxu0 0.0
    %297 = vmatmul.mubr.f32.gmra.mrb[0].mxu0 %v225
    %v298 = vpop.f32.mrb[0].mxu0
    %v299 = vadd.f32 %v218, %v298
    %v300 = vpop.f32.mrb[0].mxu0
    %301 = vdwg.mxu0
    %v302 = vmax.f32 %v294, 0.0
    %v303 = vmax.f32 %v299, 0.0
    %s304 = scalar_lea.vmem %s1, 64
    %v305 = vld [vmem:[%s304] sm:$0xff]
    %306 = vset.pattern.permute.xlu0 2
    %307 = vperm.xlu0 %306, %v31
    %v308 = vpop.permute.xlu0 %307
    %vm310 = vcmask 130048
    %v312 = vsel %vm310, %v305, 0
    %314 = vmatprep.subr.mxu0 0.0
    %315 = vmatpush1.msra.mxu0 %v302
    %316 = vmatprep.subr.mxu0 0.0
    %317 = vmatpush1.msra.mxu0 %v303
    %318 = vmatprep.subr.mxu0 0.0
    %319 = vmatpush1.msra.mxu0 0.0
    %320 = vmatprep.subr.mxu0 0.0
    %321 = vmatpush1.msra.mxu0 0.0
    %322 = vmatprep.subr.mxu0 0.0
    %323 = vmatpush1.msra.mxu0 0.0
    %324 = vmatprep.subr.mxu0 0.0
    %325 = vmatpush1.msra.mxu0 0.0
    %326 = vmatprep.subr.mxu0 0.0
    %327 = vmatpush1.msra.mxu0 0.0
    %328 = vmatprep.subr.mxu0 0.0
    %329 = vmatpush1.msra.mxu0 0.0
    %330 = vmatprep.subr.mxu0 0.0
    %331 = vmatpush1.msra.mxu0 0.0
    %332 = vmatprep.subr.mxu0 0.0
    %333 = vmatpush1.msra.mxu0 0.0
    %334 = vmatprep.subr.mxu0 0.0
    %335 = vmatpush1.msra.mxu0 0.0
    %336 = vmatprep.subr.mxu0 0.0
    %337 = vmatpush1.msra.mxu0 0.0
    %338 = vmatprep.subr.mxu0 0.0
    %339 = vmatpush1.msra.mxu0 0.0
    %340 = vmatprep.subr.mxu0 0.0
    %341 = vmatpush1.msra.mxu0 0.0
    %342 = vmatprep.subr.mxu0 0.0
    %343 = vmatpush1.msra.mxu0 0.0
    %344 = vmatprep.subr.mxu0 0.0
    %345 = vmatpush1.msra.mxu0 0.0
    %346 = vmatprep.subr.mxu0 0.0
    %347 = vmatpush1.msra.mxu0 0.0
    %348 = vmatprep.subr.mxu0 0.0
    %349 = vmatpush1.msra.mxu0 0.0
    %350 = vmatprep.subr.mxu0 0.0
    %351 = vmatpush1.msra.mxu0 0.0
    %352 = vmatprep.subr.mxu0 0.0
    %353 = vmatpush1.msra.mxu0 0.0
    %354 = vmatprep.subr.mxu0 0.0
    %355 = vmatpush1.msra.mxu0 0.0
    %356 = vmatprep.subr.mxu0 0.0
    %357 = vmatpush1.msra.mxu0 0.0
    %358 = vmatprep.subr.mxu0 0.0
    %359 = vmatpush1.msra.mxu0 0.0
    %360 = vmatprep.subr.mxu0 0.0
    %361 = vmatpush1.msra.mxu0 0.0
    %362 = vmatprep.subr.mxu0 0.0
    %363 = vmatpush1.msra.mxu0 0.0
    %364 = vmatprep.subr.mxu0 0.0
    %365 = vmatpush1.msra.mxu0 0.0
    %366 = vmatprep.subr.mxu0 0.0
    %367 = vmatpush1.msra.mxu0 0.0
    %368 = vmatprep.subr.mxu0 0.0
    %369 = vmatpush1.msra.mxu0 0.0
    %370 = vmatprep.subr.mxu0 0.0
    %371 = vmatpush1.msra.mxu0 0.0
    %372 = vmatprep.subr.mxu0 0.0
    %373 = vmatpush1.msra.mxu0 0.0
    %374 = vmatprep.subr.mxu0 0.0
    %375 = vmatpush1.msra.mxu0 0.0
    %376 = vmatprep.subr.mxu0 0.0
    %377 = vmatpush1.msra.mxu0 0.0
    %378 = vmatprep.mubr.f32.mxu0 0.0
    %379 = vmatmul.mubr.f32.gmra.mrb[0].mxu0 %v312
    %v380 = vpop.f32.mrb[0].mxu0
    %v381 = vadd.f32 %v308, %v380
    %v382 = vpop.f32.mrb[0].mxu0
    %383 = vdwg.mxu0
    %v384 = vmax.f32 %v381, 0.0
    %s385 = scalar_lea.vmem %s1, 96
    %v386 = vld [vmem:[%s385] sm:$0xff]
    %387 = vset.pattern.permute.xlu0 3
    %388 = vperm.xlu0 %387, %v31
    %v389 = vpop.permute.xlu0 %388
    %vm391 = vcmask 64512
    %v393 = vsel %vm391, %v386, 0
    %395 = vmatprep.subr.mxu0 0.0
    %396 = vmatpush1.msra.mxu0 %v384
    %397 = vmatprep.subr.mxu0 0.0
    %398 = vmatpush1.msra.mxu0 0.0
    %399 = vmatprep.subr.mxu0 0.0
    %400 = vmatpush1.msra.mxu0 0.0
    %401 = vmatprep.subr.mxu0 0.0
    %402 = vmatpush1.msra.mxu0 0.0
    %403 = vmatprep.subr.mxu0 0.0
    %404 = vmatpush1.msra.mxu0 0.0
    %405 = vmatprep.subr.mxu0 0.0
    %406 = vmatpush1.msra.mxu0 0.0
    %407 = vmatprep.subr.mxu0 0.0
    %408 = vmatpush1.msra.mxu0 0.0
    %409 = vmatprep.subr.mxu0 0.0
    %410 = vmatpush1.msra.mxu0 0.0
    %411 = vmatprep.subr.mxu0 0.0
    %412 = vmatpush1.msra.mxu0 0.0
    %413 = vmatprep.subr.mxu0 0.0
    %414 = vmatpush1.msra.mxu0 0.0
    %415 = vmatprep.subr.mxu0 0.0
    %416 = vmatpush1.msra.mxu0 0.0
    %417 = vmatprep.subr.mxu0 0.0
    %418 = vmatpush1.msra.mxu0 0.0
    %419 = vmatprep.subr.mxu0 0.0
    %420 = vmatpush1.msra.mxu0 0.0
    %421 = vmatprep.subr.mxu0 0.0
    %422 = vmatpush1.msra.mxu0 0.0
    %423 = vmatprep.subr.mxu0 0.0
    %424 = vmatpush1.msra.mxu0 0.0
    %425 = vmatprep.subr.mxu0 0.0
    %426 = vmatpush1.msra.mxu0 0.0
    %427 = vmatprep.subr.mxu0 0.0
    %428 = vmatpush1.msra.mxu0 0.0
    %429 = vmatprep.subr.mxu0 0.0
    %430 = vmatpush1.msra.mxu0 0.0
    %431 = vmatprep.subr.mxu0 0.0
    %432 = vmatpush1.msra.mxu0 0.0
    %433 = vmatprep.subr.mxu0 0.0
    %434 = vmatpush1.msra.mxu0 0.0
    %435 = vmatprep.subr.mxu0 0.0
    %436 = vmatpush1.msra.mxu0 0.0
    %437 = vmatprep.subr.mxu0 0.0
    %438 = vmatpush1.msra.mxu0 0.0
    %439 = vmatprep.subr.mxu0 0.0
    %440 = vmatpush1.msra.mxu0 0.0
    %441 = vmatprep.subr.mxu0 0.0
    %442 = vmatpush1.msra.mxu0 0.0
    %443 = vmatprep.subr.mxu0 0.0
    %444 = vmatpush1.msra.mxu0 0.0
    %445 = vmatprep.subr.mxu0 0.0
    %446 = vmatpush1.msra.mxu0 0.0
    %447 = vmatprep.subr.mxu0 0.0
    %448 = vmatpush1.msra.mxu0 0.0
    %449 = vmatprep.subr.mxu0 0.0
    %450 = vmatpush1.msra.mxu0 0.0
    %451 = vmatprep.subr.mxu0 0.0
    %452 = vmatpush1.msra.mxu0 0.0
    %453 = vmatprep.subr.mxu0 0.0
    %454 = vmatpush1.msra.mxu0 0.0
    %455 = vmatprep.subr.mxu0 0.0
    %456 = vmatpush1.msra.mxu0 0.0
    %457 = vmatprep.subr.mxu0 0.0
    %458 = vmatpush1.msra.mxu0 0.0
    %459 = vmatprep.mubr.f32.mxu0 0.0
    %460 = vmatmul.mubr.f32.gmra.mrb[0].mxu0 %v393
    %v461 = vpop.f32.mrb[0].mxu0
    %v462 = vadd.f32 %v389, %v461
    %v463 = vpop.f32.mrb[0].mxu0
    %464 = vdwg.mxu0
    %465 = vst [vmem:[#allocation2] sm:$0x1] %v462
    // Predicated region
    $region14: #{tpu_custom_call.1} parent=1 // pred_check
      _
    $region15: #{tpu_custom_call.1} parent=1 // pred_check_branch
      %467 = sbr.rel (0) target = $region17
    $region16: #{tpu_custom_call.1} parent=1 // pred_region
      %s469 = ssub.s32 16, 16
      %470 = vsyncadd [#allocation3], %s469
      %s472 = sshll.u32 [#allocation2], 4
      %s473 = int_to_ptr.vmem [resolvable:$true] %s472
      %475 = dma.vmem_to_hbm [thread:$0]  %s473, 16, %s3, [#allocation3]
    $region17: #{tpu_custom_call.1} parent=1 // pred_fallthru
      _
    // Predicated region
    $region18: #{tpu_custom_call.1} parent=1 // pred_check
      _
    $region19: #{tpu_custom_call.1} parent=1 // pred_check_branch
      %477 = sbr.rel (0) target = $region21
    $region20: #{tpu_custom_call.1} parent=1 // pred_region
      %478 = dma.done [#allocation3], 16
    $region21: #{tpu_custom_call.1} parent=1 // pred_fallthru
      _
    %479 = vsyncpa [#allocation3], 1

</llo_original>
